<compile_context>
chip_gen: v7x
topology: tpu7x:2x2x1
jax: 0.10.0
libtpu: 0.0.40
codegen_flags: <defaults>
</compile_context>

<pallas_src>
import jax
import jax.numpy as jnp
from jax.experimental import pallas as pl
from jax.experimental.pallas import tpu as pltpu


def _round_up(x, m):
    return (x + m - 1) // m * m


# ----------------------------- kernels --------------------------------------


def _ffn_kernel_plain(x_ref, w1_ref, b1_ref, w2_ref, b2_ref, o_ref, acc_ref):
    f = pl.program_id(1)

    @pl.when(f == 0)
    def _init():
        acc_ref[...] = jnp.zeros_like(acc_ref)

    x = x_ref[...]
    # [tm, d_model] @ [d_model, tf] -> [tm, tf]   (f32 accum on MXU)
    h = jnp.dot(x, w1_ref[...], preferred_element_type=jnp.float32) + b1_ref[...]
    h = jnp.maximum(h, 0.0)                      # ReLU on VPU
    # dropout: identity (eval mode)
    # [tm, tf] @ [tf, d_model] -> accumulate into [tm, d_model]
    acc_ref[...] += jnp.dot(h.astype(w2_ref.dtype), w2_ref[...],
                            preferred_element_type=jnp.float32)

    @pl.when(f == pl.num_programs(1) - 1)
    def _finalize():
        o_ref[...] = (acc_ref[...] + b2_ref[...]).astype(o_ref.dtype)


def _ffn_kernel_gated(x_ref, w1v_ref, b1v_ref, w2_ref, b2_ref, o_ref, acc_ref):
    f = pl.program_id(1)

    @pl.when(f == 0)
    def _init():
        acc_ref[...] = jnp.zeros_like(acc_ref)

    tf = w2_ref.shape[0]                         # static tile size
    x = x_ref[...]
    # ONE MXU pass for both g and v: [tm, d_model] @ [d_model, 2*tf]
    hv = jnp.dot(x, w1v_ref[...], preferred_element_type=jnp.float32) + b1v_ref[...]
    g = jnp.maximum(hv[:, :tf], 0.0)             # activation(layer1(x))
    v = hv[:, tf:]                               # linear_v(x)
    h = g * v
    # dropout: identity (eval mode)
    acc_ref[...] += jnp.dot(h.astype(w2_ref.dtype), w2_ref[...],
                            preferred_element_type=jnp.float32)

    @pl.when(f == pl.num_programs(1) - 1)
    def _finalize():
        o_ref[...] = (acc_ref[...] + b2_ref[...]).astype(o_ref.dtype)


# ----------------------------- wrapper ---------------------------------------


def feed_forward(x, params, *, is_gated=False, row_tile=256, ff_tile=512,
                 vmem_limit_bytes=64 * 1024 * 1024):
    """x: [..., d_model] -> [..., d_model]  (fused, tiled FFN on TPU).

    row_tile: M-tile over tokens (8-aligned; ragged N is zero-padded).
    ff_tile : d_ff reduction tile (multiple of 128 when d_ff is tiled).
              On v7x (64 MiB VMEM/TC) prefer ff_tile <= 1024 for big d_model.
    """
    d_model = x.shape[-1]
    lead_shape = x.shape[:-1]
    x2d = x.reshape(-1, d_model)
    n_rows = x2d.shape[0]

    w1, b1 = params["w1"], params["b1"]          # [d_model, d_ff], [1, d_ff]
    w2, b2 = params["w2"], params["b2"]          # [d_ff, d_model], [1, d_model]
    d_ff = w1.shape[1]
    if is_gated:
        wv, bv = params["wv"], params["bv"]

    # ---- row tiling (pad ragged N up to a multiple of the 8-aligned tile) ----
    tm = min(row_tile, _round_up(n_rows, 8))
    tm = max(8, (tm // 8) * 8)
    n_rows_p = _round_up(n_rows, tm)
    if n_rows_p != n_rows:
        x2d = jnp.pad(x2d, ((0, n_rows_p - n_rows), (0, 0)))

    # ---- d_ff (reduction) tiling; zero-pad d_ff so every tile is full ----
    if d_ff <= ff_tile:
        tf, d_ff_p = d_ff, d_ff
    else:
        tf = max(128, (ff_tile // 128) * 128)
        d_ff_p = _round_up(d_ff, tf)
    if d_ff_p != d_ff:
        pad_f = d_ff_p - d_ff
        w1 = jnp.pad(w1, ((0, 0), (0, pad_f)))
        b1 = jnp.pad(b1, ((0, 0), (0, pad_f)))
        w2 = jnp.pad(w2, ((0, pad_f), (0, 0)))
        if is_gated:
            wv = jnp.pad(wv, ((0, 0), (0, pad_f)))
            bv = jnp.pad(bv, ((0, 0), (0, pad_f)))

    nf = d_ff_p // tf
    grid = (n_rows_p // tm, nf)                  # reduction axis LAST

    x_spec = pl.BlockSpec((tm, d_model), lambda i, f: (i, 0))
    out_spec = pl.BlockSpec((tm, d_model), lambda i, f: (i, 0))
    w2_spec = pl.BlockSpec((tf, d_model), lambda i, f: (f, 0))
    b2_spec = pl.BlockSpec((1, d_model), lambda i, f: (0, 0))

    if is_gated:
        # Interleave W1/Wv (and b1/bv) tiles along d_ff so grid step f streams
        # one contiguous [d_model, 2*tf] block = [W1_tile_f | Wv_tile_f].
        w1v = jnp.stack([w1.reshape(d_model, nf, tf),
                         wv.reshape(d_model, nf, tf)], axis=2)
        w1v = w1v.reshape(d_model, 2 * d_ff_p)
        b1v = jnp.stack([b1.reshape(1, nf, tf),
                         bv.reshape(1, nf, tf)], axis=2).reshape(1, 2 * d_ff_p)
        kernel = _ffn_kernel_gated
        operands = (x2d, w1v, b1v, w2, b2)
        in_specs = [x_spec,
                    pl.BlockSpec((d_model, 2 * tf), lambda i, f: (0, f)),
                    pl.BlockSpec((1, 2 * tf), lambda i, f: (0, f)),
                    w2_spec, b2_spec]
        n_mm = 3
    else:
        kernel = _ffn_kernel_plain
        operands = (x2d, w1, b1, w2, b2)
        in_specs = [x_spec,
                    pl.BlockSpec((d_model, tf), lambda i, f: (0, f)),
                    pl.BlockSpec((1, tf), lambda i, f: (0, f)),
                    w2_spec, b2_spec]
        n_mm = 2

    itemsize = jnp.dtype(x.dtype).itemsize
    cost = pl.CostEstimate(
        flops=2 * n_rows_p * d_model * d_ff_p * n_mm,
        transcendentals=0,
        bytes_accessed=itemsize * (2 * n_rows_p * d_model
                                   + n_mm * d_model * d_ff_p
                                   + (n_mm - 1) * d_ff_p + d_model),
    )

    out2d = pl.pallas_call(
        kernel,
        out_shape=jax.ShapeDtypeStruct((n_rows_p, d_model), x.dtype),
        grid_spec=pltpu.PrefetchScalarGridSpec(
            num_scalar_prefetch=0,
            grid=grid,
            in_specs=in_specs,
            out_specs=out_spec,
            scratch_shapes=[pltpu.VMEM((tm, d_model), jnp.float32)],
        ),
        compiler_params=pltpu.CompilerParams(
            dimension_semantics=("parallel", "arbitrary"),
            vmem_limit_bytes=vmem_limit_bytes),
        cost_estimate=cost,
    )(*operands)

    return out2d[:n_rows].reshape(*lead_shape, d_model)


# ---------------------- deterministic param init -----------------------------


def init_params(key, d_model, d_ff, *, is_gated=False, dtype=jnp.float32):
    """Mimics nn.Linear init shapes; weights stored pre-transposed [in, out]."""
    ks = jax.random.split(key, 6)
    lim1 = 1.0 / (d_model ** 0.5)
    lim2 = 1.0 / (d_ff ** 0.5)
    p = {
        "w1": jax.random.uniform(ks[0], (d_model, d_ff), dtype, -lim1, lim1),
        "b1": jax.random.uniform(ks[1], (1, d_ff), dtype, -lim1, lim1),
        "w2": jax.random.uniform(ks[2], (d_ff, d_model), dtype, -lim2, lim2),
        "b2": jax.random.uniform(ks[3], (1, d_model), dtype, -lim2, lim2),
    }
    if is_gated:
        p["wv"] = jax.random.uniform(ks[4], (d_model, d_ff), dtype, -lim1, lim1)
        p["bv"] = jax.random.uniform(ks[5], (1, d_ff), dtype, -lim1, lim1)
    return p


def feed_forward_ref(x, params, *, is_gated=False):
    """Pure-JAX reference of the PyTorch forward (dropout in eval mode)."""
    g = jnp.maximum(x @ params["w1"] + params["b1"][0], 0.0)
    h = g * (x @ params["wv"] + params["bv"][0]) if is_gated else g
    return h @ params["w2"] + params["b2"][0]


# --------------------------------- main --------------------------------------


if __name__ == "__main__":
    key = jax.random.PRNGKey(0)
    k_x1, k_x2, k_p1, k_p2, k_p3 = jax.random.split(key, 5)

    # 1) plain FFN, small shapes, single tile on both axes
    batch, seq, d_model, d_ff = 2, 8, 32, 64
    x = jax.random.normal(k_x1, (batch, seq, d_model), jnp.float32)
    params = init_params(k_p1, d_model, d_ff, is_gated=False)
    out = jax.block_until_ready(feed_forward(x, params, is_gated=False))
    ref = feed_forward_ref(x, params, is_gated=False)
    assert out.shape == (batch, seq, d_model)
    assert jnp.allclose(out, ref, atol=1e-5, rtol=1e-5)

    # 2) plain FFN, ragged rows + multi-step d_ff reduction + >1 row tile
    b2_, s2_, dm2, df2 = 2, 5, 128, 256          # N = 10 (padded to 16)
    x2 = jax.random.normal(k_x2, (b2_, s2_, dm2), jnp.float32)
    params2 = init_params(k_p2, dm2, df2, is_gated=False)
    out2 = jax.block_until_ready(
        feed_forward(x2, params2, is_gated=False, row_tile=8, ff_tile=128))
    ref2 = feed_forward_ref(x2, params2, is_gated=False)
    assert out2.shape == (b2_, s2_, dm2)
    assert jnp.allclose(out2, ref2, atol=5e-4, rtol=5e-4)

    # 3) gated FFN, fused W1/Wv tile + 2-step d_ff reduction
    params3 = init_params(k_p3, dm2, df2, is_gated=True)
    out3 = jax.block_until_ready(
        feed_forward(x2, params3, is_gated=True, row_tile=8, ff_tile=128))
    ref3 = feed_forward_ref(x2, params3, is_gated=True)
    assert out3.shape == (b2_, s2_, dm2)
    assert jnp.allclose(out3, ref3, atol=5e-4, rtol=5e-4)

    print("KERNEL_OK")
</pallas_src>

<mosaic_0001>
module attributes {stable_mosaic.version = 11 : i64} {
  func.func @_ffn_kernel_plain(%arg0: i32, %arg1: i32, %arg2: memref<16x32xf32, #tpu.memory_space<vmem>>, %arg3: memref<32x64xf32, #tpu.memory_space<vmem>>, %arg4: memref<1x64xf32, #tpu.memory_space<vmem>>, %arg5: memref<64x32xf32, #tpu.memory_space<vmem>>, %arg6: memref<1x32xf32, #tpu.memory_space<vmem>>, %arg7: memref<16x32xf32, #tpu.memory_space<vmem>>, %arg8: memref<16x32xf32, #tpu.memory_space<vmem>>) attributes {dimension_semantics = [#tpu.dimension_semantics<parallel>, #tpu.dimension_semantics<arbitrary>], iteration_bounds = array<i64: 1, 1>, scalar_prefetch = 0 : i64, scratch_operands = 1 : i64, tpu.core_type = #tpu.core_type<tc>, window_params = [{transform_indices = @transform_0, window_bounds = array<i64: 16, 32>}, {transform_indices = @transform_1, window_bounds = array<i64: 32, 64>}, {transform_indices = @transform_2, window_bounds = array<i64: 1, 64>}, {transform_indices = @transform_3, window_bounds = array<i64: 64, 32>}, {pipeline_mode = #tpu.pipeline_mode<synchronous>, transform_indices = @transform_4, window_bounds = array<i64: 1, 32>}, {transform_indices = @transform_5, window_bounds = array<i64: 16, 32>}]} {
    %c0_i32 = arith.constant 0 : i32
    %0 = arith.cmpi eq, %arg1, %c0_i32 : i32
    %1 = arith.extui %0 : i1 to i32
    %c0_i32_0 = arith.constant 0 : i32
    %2 = arith.cmpi ne, %1, %c0_i32_0 : i32
    scf.if %2 {
      %cst_16 = arith.constant 0.000000e+00 : f32
      %19 = vector.broadcast %cst_16 : f32 to vector<16x32xf32>
      %c0_17 = arith.constant 0 : index
      %c0_18 = arith.constant 0 : index
      %20 = vector.load %arg8[%c0_17, %c0_18] : memref<16x32xf32, #tpu.memory_space<vmem>>, vector<16x32xf32>
      tpu.vector_store %arg8[%c0_17, %c0_18], %19 {strides = array<i32>} : memref<16x32xf32, #tpu.memory_space<vmem>>, vector<16x32xf32>,
    } else {
    }
    %c0 = arith.constant 0 : index
    %c0_1 = arith.constant 0 : index
    %3 = vector.load %arg2[%c0, %c0_1] : memref<16x32xf32, #tpu.memory_space<vmem>>, vector<16x32xf32>
    %c0_2 = arith.constant 0 : index
    %c0_3 = arith.constant 0 : index
    %4 = vector.load %arg3[%c0_2, %c0_3] : memref<32x64xf32, #tpu.memory_space<vmem>>, vector<32x64xf32>
    %cst = arith.constant dense<0.000000e+00> : vector<16x64xf32>
    %5 = tpu.matmul %3, %4, %cst {dimension_numbers = #tpu.dot_dimension_numbers<[1], [0], [0], [1], [0, 0, 1, 1], [], []>} : vector<16x32xf32>, vector<32x64xf32>, vector<16x64xf32> -> vector<16x64xf32>
    %c0_4 = arith.constant 0 : index
    %c0_5 = arith.constant 0 : index
    %6 = vector.load %arg4[%c0_4, %c0_5] : memref<1x64xf32, #tpu.memory_space<vmem>>, vector<1x64xf32>
    %7 = vector.broadcast %6 : vector<1x64xf32> to vector<16x64xf32>
    %8 = arith.addf %5, %7 : vector<16x64xf32>
    %cst_6 = arith.constant 0.000000e+00 : f32
    %9 = vector.broadcast %cst_6 : f32 to vector<16x64xf32>
    %10 = arith.maximumf %8, %9 : vector<16x64xf32>
    %c0_7 = arith.constant 0 : index
    %c0_8 = arith.constant 0 : index
    %11 = vector.load %arg8[%c0_7, %c0_8] : memref<16x32xf32, #tpu.memory_space<vmem>>, vector<16x32xf32>
    %c0_9 = arith.constant 0 : index
    %c0_10 = arith.constant 0 : index
    %12 = vector.load %arg5[%c0_9, %c0_10] : memref<64x32xf32, #tpu.memory_space<vmem>>, vector<64x32xf32>
    %cst_11 = arith.constant dense<0.000000e+00> : vector<16x32xf32>
    %13 = tpu.matmul %10, %12, %cst_11 {dimension_numbers = #tpu.dot_dimension_numbers<[1], [0], [0], [1], [0, 0, 1, 1], [], []>} : vector<16x64xf32>, vector<64x32xf32>, vector<16x32xf32> -> vector<16x32xf32>
    %14 = arith.addf %11, %13 : vector<16x32xf32>
    %c0_12 = arith.constant 0 : index
    %c0_13 = arith.constant 0 : index
    %15 = vector.load %arg8[%c0_12, %c0_13] : memref<16x32xf32, #tpu.memory_space<vmem>>, vector<16x32xf32>
    tpu.vector_store %arg8[%c0_12, %c0_13], %14 {strides = array<i32>} : memref<16x32xf32, #tpu.memory_space<vmem>>, vector<16x32xf32>,
    %c0_i32_14 = arith.constant 0 : i32
    %16 = arith.cmpi eq, %arg1, %c0_i32_14 : i32
    %17 = arith.extui %16 : i1 to i32
    %c0_i32_15 = arith.constant 0 : i32
    %18 = arith.cmpi ne, %17, %c0_i32_15 : i32
    scf.if %18 {
      %c0_16 = arith.constant 0 : index
      %c0_17 = arith.constant 0 : index
      %19 = vector.load %arg8[%c0_16, %c0_17] : memref<16x32xf32, #tpu.memory_space<vmem>>, vector<16x32xf32>
      %c0_18 = arith.constant 0 : index
      %c0_19 = arith.constant 0 : index
      %20 = vector.load %arg6[%c0_18, %c0_19] : memref<1x32xf32, #tpu.memory_space<vmem>>, vector<1x32xf32>
      %21 = vector.broadcast %20 : vector<1x32xf32> to vector<16x32xf32>
      %22 = arith.addf %19, %21 : vector<16x32xf32>
      %c0_20 = arith.constant 0 : index
      %c0_21 = arith.constant 0 : index
      %23 = vector.load %arg7[%c0_20, %c0_21] : memref<16x32xf32, #tpu.memory_space<vmem>>, vector<16x32xf32>
      tpu.vector_store %arg7[%c0_20, %c0_21], %22 {strides = array<i32>} : memref<16x32xf32, #tpu.memory_space<vmem>>, vector<16x32xf32>,
    } else {
    }
    return
  }
  func.func @transform_0(%arg0: i32, %arg1: i32) -> (i32, i32) {
    %c0_i32 = arith.constant 0 : i32
    %c0_i32_0 = arith.constant 0 : i32
    return %arg0, %c0_i32 : i32, i32
  }
  func.func @transform_1(%arg0: i32, %arg1: i32) -> (i32, i32) {
    %c0_i32 = arith.constant 0 : i32
    %c0_i32_0 = arith.constant 0 : i32
    return %c0_i32, %arg1 : i32, i32
  }
  func.func @transform_2(%arg0: i32, %arg1: i32) -> (i32, i32) {
    %c0_i32 = arith.constant 0 : i32
    %c0_i32_0 = arith.constant 0 : i32
    return %c0_i32, %arg1 : i32, i32
  }
  func.func @transform_3(%arg0: i32, %arg1: i32) -> (i32, i32) {
    %c0_i32 = arith.constant 0 : i32
    %c0_i32_0 = arith.constant 0 : i32
    return %arg1, %c0_i32 : i32, i32
  }
  func.func @transform_4(%arg0: i32, %arg1: i32) -> (i32, i32) {
    %c0_i32 = arith.constant 0 : i32
    %c0_i32_0 = arith.constant 0 : i32
    %c0_i32_1 = arith.constant 0 : i32
    return %c0_i32, %c0_i32_0 : i32, i32
  }
  func.func @transform_5(%arg0: i32, %arg1: i32) -> (i32, i32) {
    %c0_i32 = arith.constant 0 : i32
    %c0_i32_0 = arith.constant 0 : i32
    return %arg0, %c0_i32 : i32, i32
  }
}

</mosaic_0001>

<llo_original>
// kernel: tpu_custom_call.1
$region0: #{tpu_custom_call.1}
  #allocation0 [shape = 'u32[]', space=smem, size = 0x4, offset = 0x4, fixed_abs, tag = 'smem constant byte address 0x4 - core index']
  #allocation1 [shape = 'u32[144,128]{1,0:T(1,128)}', space=vmem, size = 0x12000, scoped, tag = 'internal scratch']
  #allocation2 [shape = 'f32[16,32]{1,0:T(8,128)}', space=vmem, size = 0x2000, scoped, tag = 'scratch operand']
  %s0 = inlined_call_operand.hbm [shape: f32[16,32], index: 0, kind: input, shape index: {}]
  %s1 = inlined_call_operand.hbm [shape: f32[32,64], index: 1, kind: input, shape index: {}]
  %s2 = inlined_call_operand.hbm [shape: f32[1,64], index: 2, kind: input, shape index: {}]
  %s3 = inlined_call_operand.hbm [shape: f32[64,32], index: 3, kind: input, shape index: {}]
  %s4 = inlined_call_operand.hbm [shape: f32[1,32], index: 4, kind: input, shape index: {}]
  %s5 = inlined_call_operand.hbm [shape: f32[16,32], index: 5, kind: output, shape index: {}]
  %s6 = sld [smem:[#allocation0]]
  $region58: #{tpu_custom_call.1} parent=0
    _
  %s8 = ssub.s32 1, %s6
  %s9 = scalar_select 0, %s8, %s6
  $region1: #{tpu_custom_call.1} parent=0
    #allocation3 [shape = 'u8[8192]{0}', space=vmem, size = 0x2000, scoped, tag = 'input window, operand 0, single buffered']
    #allocation4 [shape = 's32[1]{0}', space=sflag, size = 0x4, scoped, tag = 'scoped memory for tpu_custom_call.1']
    #allocation5 [shape = 's32[1]{0}', space=sflag, size = 0x4, scoped, tag = 'scoped memory for tpu_custom_call.1']
    #allocation6 [shape = 'u8[16384]{0}', space=vmem, size = 0x4000, scoped, tag = 'input window, operand 1, single buffered']
    #allocation7 [shape = 's32[1]{0}', space=sflag, size = 0x4, scoped, tag = 'scoped memory for tpu_custom_call.1']
    #allocation8 [shape = 'u8[512]{0}', space=vmem, size = 0x400, scoped, tag = 'input window, operand 2, single buffered']
    #allocation9 [shape = 'u8[32768]{0}', space=vmem, size = 0x8000, scoped, tag = 'input window, operand 3, single buffered']
    #allocation10 [shape = 's32[1]{0}', space=sflag, size = 0x4, scoped, tag = 'scoped memory for tpu_custom_call.1']
    #allocation11 [shape = 'u8[512]{0}', space=vmem, size = 0x400, scoped, tag = 'input window, operand 4, single buffered']
    #allocation12 [shape = 'u8[8192]{0}', space=vmem, size = 0x2000, scoped, tag = 'output window, operand 0, single buffered']
    %10 = vsyncpa [#allocation4], 0
    %11 = vsyncpa [#allocation7], 0
    %12 = vsyncpa [#allocation10], 0
    %13 = vsyncpa [#allocation5], 0
    // Predicated region
    $region2: #{tpu_custom_call.1} parent=1 // pred_check
      _
    $region3: #{tpu_custom_call.1} parent=1 // pred_check_branch
      %15 = sbr.rel (0) target = $region5
    $region4: #{tpu_custom_call.1} parent=1 // pred_region
      %s17 = ssub.s32 256, 256
      %18 = vsyncadd [#allocation4], %s17
      %s19 = sshll.u32 [#allocation3], 4
      %s20 = int_to_ptr.vmem [resolvable:$true] %s19
      %25 = dma.hbm_to_vmem [thread:$0]  %s0, 256, %s20, [#allocation4], 128, 128, 8
    $region5: #{tpu_custom_call.1} parent=1 // pred_fallthru
      _
    // Predicated region
    $region6: #{tpu_custom_call.1} parent=1 // pred_check
      _
    $region7: #{tpu_custom_call.1} parent=1 // pred_check_branch
      %27 = sbr.rel (0) target = $region9
    $region8: #{tpu_custom_call.1} parent=1 // pred_region
      %s29 = ssub.s32 512, 512
      %30 = vsyncadd [#allocation7], %s29
      %s31 = sshll.u32 [#allocation6], 4
      %s32 = int_to_ptr.vmem [resolvable:$true] %s31
      %37 = dma.hbm_to_vmem [thread:$0]  %s1, 512, %s32, [#allocation7], 128, 128, 8
    $region9: #{tpu_custom_call.1} parent=1 // pred_fallthru
      _
    // Predicated region
    $region10: #{tpu_custom_call.1} parent=1 // pred_check
      _
    $region11: #{tpu_custom_call.1} parent=1 // pred_check_branch
      %39 = sbr.rel (0) target = $region13
    $region12: #{tpu_custom_call.1} parent=1 // pred_region
      %s41 = ssub.s32 16, 16
      %42 = vsyncadd [#allocation7], %s41
      %s44 = sshll.u32 [#allocation8], 4
      %s45 = int_to_ptr.vmem [resolvable:$true] %s44
      %47 = dma.hbm_to_vmem [thread:$0]  %s2, 16, %s45, [#allocation7]
    $region13: #{tpu_custom_call.1} parent=1 // pred_fallthru
      _
    // Predicated region
    $region14: #{tpu_custom_call.1} parent=1 // pred_check
      _
    $region15: #{tpu_custom_call.1} parent=1 // pred_check_branch
      %49 = sbr.rel (0) target = $region17
    $region16: #{tpu_custom_call.1} parent=1 // pred_region
      %s51 = ssub.s32 1024, 1024
      %52 = vsyncadd [#allocation10], %s51
      %s53 = sshll.u32 [#allocation9], 4
      %s54 = int_to_ptr.vmem [resolvable:$true] %s53
      %59 = dma.hbm_to_vmem [thread:$0]  %s3, 1024, %s54, [#allocation10], 128, 128, 8
    $region17: #{tpu_custom_call.1} parent=1 // pred_fallthru
      _
    // Predicated region
    $region18: #{tpu_custom_call.1} parent=1 // pred_check
      _
    $region19: #{tpu_custom_call.1} parent=1 // pred_check_branch
      %61 = sbr.rel (0) target = $region21
    $region20: #{tpu_custom_call.1} parent=1 // pred_region
      %s63 = ssub.s32 16, 16
      %64 = vsyncadd [#allocation10], %s63
      %s66 = sshll.u32 [#allocation11], 4
      %s67 = int_to_ptr.vmem [resolvable:$true] %s66
      %69 = dma.hbm_to_vmem [thread:$0]  %s4, 16, %s67, [#allocation10]
    $region21: #{tpu_custom_call.1} parent=1 // pred_fallthru
      _
    // Predicated region
    $region22: #{tpu_custom_call.1} parent=1 // pred_check
      _
    $region23: #{tpu_custom_call.1} parent=1 // pred_check_branch
      %71 = sbr.rel (0) target = $region25
    $region24: #{tpu_custom_call.1} parent=1 // pred_region
      %72 = dma.done [#allocation4], 256
    $region25: #{tpu_custom_call.1} parent=1 // pred_fallthru
      _
    // Predicated region
    $region26: #{tpu_custom_call.1} parent=1 // pred_check
      _
    $region27: #{tpu_custom_call.1} parent=1 // pred_check_branch
      %74 = sbr.rel (0) target = $region29
    $region28: #{tpu_custom_call.1} parent=1 // pred_region
      %75 = dma.done [#allocation7], 512
    $region29: #{tpu_custom_call.1} parent=1 // pred_fallthru
      _
    // Predicated region
    $region30: #{tpu_custom_call.1} parent=1 // pred_check
      _
    $region31: #{tpu_custom_call.1} parent=1 // pred_check_branch
      %77 = sbr.rel (0) target = $region33
    $region32: #{tpu_custom_call.1} parent=1 // pred_region
      %78 = dma.done [#allocation7], 16
    $region33: #{tpu_custom_call.1} parent=1 // pred_fallthru
      _
    // Predicated region
    $region34: #{tpu_custom_call.1} parent=1 // pred_check
      _
    $region35: #{tpu_custom_call.1} parent=1 // pred_check_branch
      %80 = sbr.rel (0) target = $region37
    $region36: #{tpu_custom_call.1} parent=1 // pred_region
      %81 = dma.done [#allocation10], 1024
    $region37: #{tpu_custom_call.1} parent=1 // pred_fallthru
      _
    // Predicated region
    $region38: #{tpu_custom_call.1} parent=1 // pred_check
      _
    $region39: #{tpu_custom_call.1} parent=1 // pred_check_branch
      %83 = sbr.rel (0) target = $region41
    $region40: #{tpu_custom_call.1} parent=1 // pred_region
      %84 = dma.done [#allocation10], 16
    $region41: #{tpu_custom_call.1} parent=1 // pred_fallthru
      _
    %p85 = scmp.eq.s32.totalorder 0, 0
    // Predicated region
    $region42: #{tpu_custom_call.1} parent=1 // pred_check
      %p86 = pneg %p85
    $region43: #{tpu_custom_call.1} parent=1 // pred_check_branch
      %88 = sbr.rel (%p86) target = $region45
    $region44: #{tpu_custom_call.1} parent=1 // pred_region
      %vm89 = vcmask 261120
      %90 = vst.msk [vmem:[#allocation2] sm:$0xff] %vm89, 0.0
      %91 = vst.msk [vmem:[#allocation2 + $0x8] sm:$0xff] %vm89, 0.0
    $region45: #{tpu_custom_call.1} parent=1 // pred_fallthru
      _
    %v92 = vld [vmem:[#allocation3] sm:$0xff]
    %v93 = vld [vmem:[#allocation3 + $0x8] sm:$0xff]
    %v94 = vld [vmem:[#allocation6] sm:$0xff]
    %v95 = vld [vmem:[#allocation6 + $0x8] sm:$0xff]
    %v96 = vld [vmem:[#allocation6 + $0x10] sm:$0xff]
    %v97 = vld [vmem:[#allocation6 + $0x18] sm:$0xff]
    %v98 = vld [vmem:[#allocation8] sm:$0x1]
    %v100 = vlaneseq
    %v101 = vshrl.u32 %v100, 7
    %v102 = vsub.s32 0, %v101
    %v103 = vrot.slane %v98, %v102
    %vm105 = vcmask 261120
    %v107 = vsel %vm105, %v92, 0
    %v110 = vsel %vm105, %v93, 0
    %112 = vmatprep.subr.mxu0 0.0
    %113 = vmatpush1.msra.mxu0 %v94
    %114 = vmatprep.subr.mxu0 0.0
    %115 = vmatpush1.msra.mxu0 %v95
    %116 = vmatprep.subr.mxu0 0.0
    %117 = vmatpush1.msra.mxu0 %v96
    %118 = vmatprep.subr.mxu0 0.0
    %119 = vmatpush1.msra.mxu0 %v97
    %120 = vmatprep.subr.mxu0 0.0
    %121 = vmatpush1.msra.mxu0 0.0
    %122 = vmatprep.subr.mxu0 0.0
    %123 = vmatpush1.msra.mxu0 0.0
    %124 = vmatprep.subr.mxu0 0.0
    %125 = vmatpush1.msra.mxu0 0.0
    %126 = vmatprep.subr.mxu0 0.0
    %127 = vmatpush1.msra.mxu0 0.0
    %128 = vmatprep.subr.mxu0 0.0
    %129 = vmatpush1.msra.mxu0 0.0
    %130 = vmatprep.subr.mxu0 0.0
    %131 = vmatpush1.msra.mxu0 0.0
    %132 = vmatprep.subr.mxu0 0.0
    %133 = vmatpush1.msra.mxu0 0.0
    %134 = vmatprep.subr.mxu0 0.0
    %135 = vmatpush1.msra.mxu0 0.0
    %136 = vmatprep.subr.mxu0 0.0
    %137 = vmatpush1.msra.mxu0 0.0
    %138 = vmatprep.subr.mxu0 0.0
    %139 = vmatpush1.msra.mxu0 0.0
    %140 = vmatprep.subr.mxu0 0.0
    %141 = vmatpush1.msra.mxu0 0.0
    %142 = vmatprep.subr.mxu0 0.0
    %143 = vmatpush1.msra.mxu0 0.0
    %144 = vmatprep.subr.mxu0 0.0
    %145 = vmatpush1.msra.mxu0 0.0
    %146 = vmatprep.subr.mxu0 0.0
    %147 = vmatpush1.msra.mxu0 0.0
    %148 = vmatprep.subr.mxu0 0.0
    %149 = vmatpush1.msra.mxu0 0.0
    %150 = vmatprep.subr.mxu0 0.0
    %151 = vmatpush1.msra.mxu0 0.0
    %152 = vmatprep.subr.mxu0 0.0
    %153 = vmatpush1.msra.mxu0 0.0
    %154 = vmatprep.subr.mxu0 0.0
    %155 = vmatpush1.msra.mxu0 0.0
    %156 = vmatprep.subr.mxu0 0.0
    %157 = vmatpush1.msra.mxu0 0.0
    %158 = vmatprep.subr.mxu0 0.0
    %159 = vmatpush1.msra.mxu0 0.0
    %160 = vmatprep.subr.mxu0 0.0
    %161 = vmatpush1.msra.mxu0 0.0
    %162 = vmatprep.subr.mxu0 0.0
    %163 = vmatpush1.msra.mxu0 0.0
    %164 = vmatprep.subr.mxu0 0.0
    %165 = vmatpush1.msra.mxu0 0.0
    %166 = vmatprep.subr.mxu0 0.0
    %167 = vmatpush1.msra.mxu0 0.0
    %168 = vmatprep.subr.mxu0 0.0
    %169 = vmatpush1.msra.mxu0 0.0
    %170 = vmatprep.subr.mxu0 0.0
    %171 = vmatpush1.msra.mxu0 0.0
    %172 = vmatprep.subr.mxu0 0.0
    %173 = vmatpush1.msra.mxu0 0.0
    %174 = vmatprep.subr.mxu0 0.0
    %175 = vmatpush1.msra.mxu0 0.0
    %176 = vmatprep.mubr.f32.mxu0 0.0
    %177 = vmatmul.mubr.f32.gmra.mrb[0].mxu0 %v107
    %v178 = vpop.f32.mrb[0].mxu0
    %v179 = vadd.f32 %v103, %v178
    %v180 = vpop.f32.mrb[0].mxu0
    %181 = vmatprep.mubr.f32.mxu0 0.0
    %182 = vmatmul.mubr.f32.gmra.mrb[0].mxu0 %v110
    %v183 = vpop.f32.mrb[0].mxu0
    %v184 = vadd.f32 %v103, %v183
    %v185 = vpop.f32.mrb[0].mxu0
    %186 = vdwg.mxu0
    %v187 = vmax.f32 %v179, 0.0
    %v188 = vmax.f32 %v184, 0.0
    %v189 = vld [vmem:[#allocation2] sm:$0xff]
    %v190 = vld [vmem:[#allocation2 + $0x8] sm:$0xff]
    %v191 = vld [vmem:[#allocation9] sm:$0xff]
    %v192 = vld [vmem:[#allocation9 + $0x8] sm:$0xff]
    %v193 = vld [vmem:[#allocation9 + $0x10] sm:$0xff]
    %v194 = vld [vmem:[#allocation9 + $0x18] sm:$0xff]
    %v195 = vld [vmem:[#allocation9 + $0x20] sm:$0xff]
    %v196 = vld [vmem:[#allocation9 + $0x28] sm:$0xff]
    %v197 = vld [vmem:[#allocation9 + $0x30] sm:$0xff]
    %v198 = vld [vmem:[#allocation9 + $0x38] sm:$0xff]
    %vm199 = vcmask 523264
    %v201 = vsel %vm199, %v187, 0
    %v204 = vsel %vm199, %v188, 0
    %206 = vmatprep.subr.mxu0 0.0
    %207 = vmatpush1.msra.mxu0 %v191
    %208 = vmatprep.subr.mxu0 0.0
    %209 = vmatpush1.msra.mxu0 %v192
    %210 = vmatprep.subr.mxu0 0.0
    %211 = vmatpush1.msra.mxu0 %v193
    %212 = vmatprep.subr.mxu0 0.0
    %213 = vmatpush1.msra.mxu0 %v194
    %214 = vmatprep.subr.mxu0 0.0
    %215 = vmatpush1.msra.mxu0 %v195
    %216 = vmatprep.subr.mxu0 0.0
    %217 = vmatpush1.msra.mxu0 %v196
    %218 = vmatprep.subr.mxu0 0.0
    %219 = vmatpush1.msra.mxu0 %v197
    %220 = vmatprep.subr.mxu0 0.0
    %221 = vmatpush1.msra.mxu0 %v198
    %222 = vmatprep.subr.mxu0 0.0
    %223 = vmatpush1.msra.mxu0 0.0
    %224 = vmatprep.subr.mxu0 0.0
    %225 = vmatpush1.msra.mxu0 0.0
    %226 = vmatprep.subr.mxu0 0.0
    %227 = vmatpush1.msra.mxu0 0.0
    %228 = vmatprep.subr.mxu0 0.0
    %229 = vmatpush1.msra.mxu0 0.0
    %230 = vmatprep.subr.mxu0 0.0
    %231 = vmatpush1.msra.mxu0 0.0
    %232 = vmatprep.subr.mxu0 0.0
    %233 = vmatpush1.msra.mxu0 0.0
    %234 = vmatprep.subr.mxu0 0.0
    %235 = vmatpush1.msra.mxu0 0.0
    %236 = vmatprep.subr.mxu0 0.0
    %237 = vmatpush1.msra.mxu0 0.0
    %238 = vmatprep.subr.mxu0 0.0
    %239 = vmatpush1.msra.mxu0 0.0
    %240 = vmatprep.subr.mxu0 0.0
    %241 = vmatpush1.msra.mxu0 0.0
    %242 = vmatprep.subr.mxu0 0.0
    %243 = vmatpush1.msra.mxu0 0.0
    %244 = vmatprep.subr.mxu0 0.0
    %245 = vmatpush1.msra.mxu0 0.0
    %246 = vmatprep.subr.mxu0 0.0
    %247 = vmatpush1.msra.mxu0 0.0
    %248 = vmatprep.subr.mxu0 0.0
    %249 = vmatpush1.msra.mxu0 0.0
    %250 = vmatprep.subr.mxu0 0.0
    %251 = vmatpush1.msra.mxu0 0.0
    %252 = vmatprep.subr.mxu0 0.0
    %253 = vmatpush1.msra.mxu0 0.0
    %254 = vmatprep.subr.mxu0 0.0
    %255 = vmatpush1.msra.mxu0 0.0
    %256 = vmatprep.subr.mxu0 0.0
    %257 = vmatpush1.msra.mxu0 0.0
    %258 = vmatprep.subr.mxu0 0.0
    %259 = vmatpush1.msra.mxu0 0.0
    %260 = vmatprep.subr.mxu0 0.0
    %261 = vmatpush1.msra.mxu0 0.0
    %262 = vmatprep.subr.mxu0 0.0
    %263 = vmatpush1.msra.mxu0 0.0
    %264 = vmatprep.subr.mxu0 0.0
    %265 = vmatpush1.msra.mxu0 0.0
    %266 = vmatprep.subr.mxu0 0.0
    %267 = vmatpush1.msra.mxu0 0.0
    %268 = vmatprep.subr.mxu0 0.0
    %269 = vmatpush1.msra.mxu0 0.0
    %270 = vmatprep.mubr.f32.mxu0 0.0
    %271 = vmatmul.mubr.f32.gmra.mrb[0].mxu0 %v201
    %v272 = vpop.f32.mrb[0].mxu0
    %v273 = vadd.f32 0.0, %v272
    %v274 = vpop.f32.mrb[0].mxu0
    %275 = vmatprep.mubr.f32.mxu0 0.0
    %276 = vmatmul.mubr.f32.gmra.mrb[0].mxu0 %v204
    %v277 = vpop.f32.mrb[0].mxu0
    %v278 = vadd.f32 0.0, %v277
    %v279 = vpop.f32.mrb[0].mxu0
    %280 = vdwg.mxu0
    %v281 = vadd.f32 %v189, %v273
    %v282 = vadd.f32 %v190, %v278
    %283 = vst.msk [vmem:[#allocation2] sm:$0xff] %vm105, %v281
    %284 = vst.msk [vmem:[#allocation2 + $0x8] sm:$0xff] %vm105, %v282
    // Predicated region
    $region46: #{tpu_custom_call.1} parent=1 // pred_check
      %p285 = pneg %p85
    $region47: #{tpu_custom_call.1} parent=1 // pred_check_branch
      %287 = sbr.rel (%p285) target = $region49
    $region48: #{tpu_custom_call.1} parent=1 // pred_region
      %v288 = vld [vmem:[#allocation2] sm:$0xff]
      %v289 = vld [vmem:[#allocation2 + $0x8] sm:$0xff]
      %v290 = vld [vmem:[#allocation11] sm:$0x1]
      %v292 = vlaneseq
      %v293 = vshrl.u32 %v292, 7
      %v294 = vsub.s32 0, %v293
      %v295 = vrot.slane %v290, %v294
      %v297 = vadd.f32 %v288, %v295
      %v298 = vadd.f32 %v289, %v295
      %299 = vst.msk [vmem:[#allocation12] sm:$0xff] %vm105, %v297
      %300 = vst.msk [vmem:[#allocation12 + $0x8] sm:$0xff] %vm105, %v298
    $region49: #{tpu_custom_call.1} parent=1 // pred_fallthru
      _
    // Predicated region
    $region50: #{tpu_custom_call.1} parent=1 // pred_check
      _
    $region51: #{tpu_custom_call.1} parent=1 // pred_check_branch
      %302 = sbr.rel (0) target = $region53
    $region52: #{tpu_custom_call.1} parent=1 // pred_region
      %s304 = ssub.s32 256, 256
      %305 = vsyncadd [#allocation5], %s304
      %s306 = sshll.u32 [#allocation12], 4
      %s307 = int_to_ptr.vmem [resolvable:$true] %s306
      %312 = dma.vmem_to_hbm [thread:$0]  %s307, 256, %s5, [#allocation5], 128, 128, 8
    $region53: #{tpu_custom_call.1} parent=1 // pred_fallthru
      _
    // Predicated region
    $region54: #{tpu_custom_call.1} parent=1 // pred_check
      _
    $region55: #{tpu_custom_call.1} parent=1 // pred_check_branch
      %314 = sbr.rel (0) target = $region57
    $region56: #{tpu_custom_call.1} parent=1 // pred_region
      %315 = dma.done [#allocation5], 256
    $region57: #{tpu_custom_call.1} parent=1 // pred_fallthru
      _
    %316 = vsyncpa [#allocation4], 1
    %317 = vsyncpa [#allocation7], 1
    %318 = vsyncpa [#allocation10], 1
    %319 = vsyncpa [#allocation5], 1

</llo_original>
